<compile_context>
chip_gen: v7x
topology: tpu7x:2x2x1
jax: 0.10.0
libtpu: 0.0.40
codegen_flags: <defaults>
</compile_context>

<pallas_src>
import functools

import jax
import jax.numpy as jnp
from jax.experimental import pallas as pl
from jax.experimental.pallas import tpu as pltpu


def _quick_gelu_f32(x):
    # Activation math in f32 on the EUP (v5e has no bf16 VPU/EUP path).
    return x * jax.nn.sigmoid(1.702 * x)


def _round_up(x, m):
    return (x + m - 1) // m * m


def _vmem_capacity_bytes():
    try:
        return int(pltpu.get_tpu_info().vmem_capacity_bytes)
    except Exception:
        return 128 * 1024 * 1024  # v5e/v6e default


# ---------------------------------------------------------------------------
# Kernels
# ---------------------------------------------------------------------------
def mlp_kernel_resident(x_ref, w1_ref, b1_ref, w2_ref, b2_ref, o_ref):
    """Both weight matrices resident in VMEM; grid only over row tiles."""
    cdt = w1_ref.dtype
    x = x_ref[...].astype(cdt)
    h = jnp.dot(x, w1_ref[...], preferred_element_type=jnp.float32) + b1_ref[...]
    h = _quick_gelu_f32(h)
    y = jnp.dot(h.astype(cdt), w2_ref[...], preferred_element_type=jnp.float32)
    o_ref[...] = (y + b2_ref[...]).astype(o_ref.dtype)


def mlp_kernel_streamed(x_ref, w1_ref, b1_ref, w2_ref, b2_ref, o_ref, acc_ref):
    """n_state chunked (reduction axis last); f32 accumulator resident over j."""
    j = pl.program_id(1)

    @pl.when(j == 0)
    def _init():
        acc_ref[...] = jnp.zeros_like(acc_ref)

    cdt = w1_ref.dtype
    x = x_ref[...].astype(cdt)
    h = jnp.dot(x, w1_ref[...], preferred_element_type=jnp.float32) + b1_ref[...]
    h = _quick_gelu_f32(h)
    acc_ref[...] += jnp.dot(h.astype(cdt), w2_ref[...],
                            preferred_element_type=jnp.float32)

    @pl.when(j == pl.num_programs(1) - 1)
    def _finalize():
        o_ref[...] = (acc_ref[...] + b2_ref[...]).astype(o_ref.dtype)


# ---------------------------------------------------------------------------
# Tile planning (pure Python, shape-only; runs outside jit)
# ---------------------------------------------------------------------------
def _align_for(dtype):
    return {4: 8, 2: 16, 1: 32}[jnp.dtype(dtype).itemsize]


def _plan(M, n_in, n_state, x_dtype, c_dtype, o_dtype, tm, tns):
    x_item = jnp.dtype(x_dtype).itemsize
    c_item = jnp.dtype(c_dtype).itemsize
    o_item = jnp.dtype(o_dtype).itemsize

    vmem_cap = _vmem_capacity_bytes()
    vmem_limit = int(vmem_cap * 0.85)  # leave headroom for compiler scratch / double buffers

    row_align = max(_align_for(x_dtype), _align_for(o_dtype), 8)

    def snap_tm(t):
        t = max(row_align, min(t, _round_up(M, row_align)))
        if t >= 256:
            t = (t // 256) * 256          # MXU-friendly on v6e/v7x (2x256x256)
        else:
            t = _round_up(t, row_align)
        return t

    explicit_tm = tm is not None
    if tm is None:
        # Roofline-driven defaults: ~512 rows on 64 MiB-class VMEM (v7x),
        # ~1024 rows on 128 MiB-class (v5e/v6e).
        tm = 512 if vmem_cap <= 96 * 1024 * 1024 else 1024
    tm = snap_tm(tm)

    if not explicit_tm:
        # Keep >= 2 row tiles when there is enough work so the "parallel"
        # axis can shard across v7x's two TensorCores.
        while tm > 256 and _round_up(M, tm) // tm < 2:
            tm = max(256, ((tm // 2) // 256) * 256)

    def fits(tm_, tns_, resident_):
        w = 2 * 2 * n_in * tns_ * c_item              # w1 + w2 slabs, double-buffered
        xb = 2 * tm_ * n_in * x_item                  # x tile, double-buffered
        ob = 2 * tm_ * n_in * o_item                  # out tile, double-buffered
        acc = 0 if resident_ else tm_ * n_in * 4      # f32 accumulator scratch
        hb = 2 * tm_ * tns_ * 4                       # f32 intermediate (+ slack)
        bias = 4 * (tns_ + n_in) * 4
        return (w + xb + ob + acc + hb + bias) <= vmem_limit

    if tns is None:
        if fits(tm, n_state, True):
            tns = n_state                              # weight-resident fast path
        else:
            cands = [c for c in range(n_state, 127, -128) if n_state % c == 0]
            tns = next((c for c in cands if fits(tm, c, False)), 128)
            if not explicit_tm:
                while not fits(tm, tns, False) and tm > 256:
                    tm = max(256, ((tm // 2) // 256) * 256)
    else:
        tns = max(128, (min(tns, n_state) // 128) * 128)
        while n_state % tns:
            tns -= 128

    resident = (tns == n_state)
    return int(tm), int(tns), bool(resident), int(vmem_limit)


# ---------------------------------------------------------------------------
# pallas_call wrappers
# ---------------------------------------------------------------------------
@functools.partial(
    jax.jit,
    static_argnames=("tm", "tns", "resident", "out_dtype_name", "vmem_limit"))
def _mlp_pallas_2d(x2d, w1, b1, w2, b2, *, tm, tns, resident, out_dtype_name,
                   vmem_limit):
    M, n_in = x2d.shape
    n_state = w1.shape[1]
    out_dtype = jnp.dtype(out_dtype_name)

    M_pad = _round_up(M, tm)
    if M_pad != M:
        # Only hit when tm does not divide M; padded rows are sliced off below.
        x2d = jnp.pad(x2d, ((0, M_pad - M), (0, 0)))

    reloads = 1 if resident else max(1, M_pad // tm)
    cost = pl.CostEstimate(
        flops=int(4 * M_pad * n_in * n_state),
        transcendentals=int(M_pad * n_state),
        bytes_accessed=int(
            M_pad * n_in * (x2d.dtype.itemsize + out_dtype.itemsize)
            + reloads * 2 * n_in * n_state * w1.dtype.itemsize
            + 4 * (n_state + n_in)),
    )

    if resident:
        out = pl.pallas_call(
            mlp_kernel_resident,
            out_shape=jax.ShapeDtypeStruct((M_pad, n_in), out_dtype),
            grid_spec=pltpu.PrefetchScalarGridSpec(
                num_scalar_prefetch=0,
                grid=(M_pad // tm,),
                in_specs=[
                    pl.BlockSpec((tm, n_in), lambda i: (i, 0)),        # x row tile
                    pl.BlockSpec((n_in, n_state), lambda i: (0, 0)),   # W_fc (DMA'd once)
                    pl.BlockSpec((1, n_state), lambda i: (0, 0)),      # b_fc
                    pl.BlockSpec((n_state, n_in), lambda i: (0, 0)),   # W_proj (DMA'd once)
                    pl.BlockSpec((1, n_in), lambda i: (0, 0)),         # b_proj
                ],
                out_specs=pl.BlockSpec((tm, n_in), lambda i: (i, 0)),
            ),
            compiler_params=pltpu.CompilerParams(
                dimension_semantics=("parallel",),
                vmem_limit_bytes=vmem_limit,
            ),
            cost_estimate=cost,
        )(x2d, w1, b1, w2, b2)
    else:
        out = pl.pallas_call(
            mlp_kernel_streamed,
            out_shape=jax.ShapeDtypeStruct((M_pad, n_in), out_dtype),
            grid_spec=pltpu.PrefetchScalarGridSpec(
                num_scalar_prefetch=0,
                grid=(M_pad // tm, n_state // tns),
                in_specs=[
                    pl.BlockSpec((tm, n_in), lambda i, j: (i, 0)),     # x row tile
                    pl.BlockSpec((n_in, tns), lambda i, j: (0, j)),    # W_fc column slab
                    pl.BlockSpec((1, tns), lambda i, j: (0, j)),       # b_fc slab
                    pl.BlockSpec((tns, n_in), lambda i, j: (j, 0)),    # W_proj row slab
                    pl.BlockSpec((1, n_in), lambda i, j: (0, 0)),      # b_proj (constant)
                ],
                out_specs=pl.BlockSpec((tm, n_in), lambda i, j: (i, 0)),
                scratch_shapes=[pltpu.VMEM((tm, n_in), jnp.float32)],  # f32 accumulator
            ),
            compiler_params=pltpu.CompilerParams(
                dimension_semantics=("parallel", "arbitrary"),
                vmem_limit_bytes=vmem_limit,
            ),
            cost_estimate=cost,
        )(x2d, w1, b1, w2, b2)

    return out[:M]


def prepare_mlp_params(w_fc, b_fc, w_proj, b_proj, compute_dtype=jnp.bfloat16):
    """Cast / reshape the parameters ONCE, outside the per-step hot path."""
    return (jnp.asarray(w_fc, compute_dtype),
            jnp.asarray(b_fc, jnp.float32).reshape(1, -1),
            jnp.asarray(w_proj, compute_dtype),
            jnp.asarray(b_proj, jnp.float32).reshape(1, -1))


def mlp_pallas(x, w_fc, b_fc, w_proj, b_proj, *, tm=None, tns=None, out_dtype=None):
    """x: (batch, seq, n_in) -> (batch, seq, n_in).

    Weights are used in the dtype they are passed in (cast them once with
    prepare_mlp_params); the kernel casts x to that dtype on the fly.
    """
    batch, seq, n_in = x.shape
    n_state = w_fc.shape[1]
    assert n_in % 128 == 0, "n_in must be a multiple of 128 (lane width)"
    assert n_state % 128 == 0, "n_state must be a multiple of 128 (lane width)"

    out_dtype = x.dtype if out_dtype is None else jnp.dtype(out_dtype)
    b1 = b_fc.reshape(1, n_state).astype(jnp.float32)
    b2 = b_proj.reshape(1, n_in).astype(jnp.float32)

    M = batch * seq
    tm, tns, resident, vmem_limit = _plan(
        M, n_in, n_state, x.dtype, w_fc.dtype, out_dtype, tm, tns)

    out = _mlp_pallas_2d(
        x.reshape(M, n_in), w_fc, b1, w_proj, b2,
        tm=tm, tns=tns, resident=resident,
        out_dtype_name=jnp.dtype(out_dtype).name, vmem_limit=vmem_limit)
    return out.reshape(batch, seq, n_in)


def mlp_reference(x, w_fc, b_fc, w_proj, b_proj):
    h = jnp.dot(x, w_fc) + b_fc
    h = _quick_gelu_f32(h)
    return jnp.dot(h, w_proj) + b_proj


if __name__ == "__main__":
    # Small GPT-style MLP shapes (n_state = 4 * n_in), lane-aligned so stores
    # are unmasked.
    batch, seq, n_in = 2, 16, 128
    n_state = 4 * n_in  # 512
    init_scale = 1.0

    key = jax.random.PRNGKey(0)
    kx, k1, k2 = jax.random.split(key, 3)

    x = jax.random.normal(kx, (batch, seq, n_in), dtype=jnp.float32)
    # Jukebox Conv1D init: weight ~ N(0, 0.02 * init_scale), bias = 0.
    w_fc = 0.02 * init_scale * jax.random.normal(k1, (n_in, n_state), dtype=jnp.float32)
    b_fc = jnp.zeros((n_state,), dtype=jnp.float32)
    w_proj = 0.02 * init_scale * jax.random.normal(k2, (n_state, n_in), dtype=jnp.float32)
    b_proj = jnp.zeros((n_in,), dtype=jnp.float32)
    # TODO(synk): resid_dropout p > 0 and the zero_out init variant are not implemented.

    ref = mlp_reference(x, w_fc, b_fc, w_proj, b_proj)

    # 1) f32 weights, forced small tiles -> exercises the streamed path
    #    (chunked n_state, f32 accumulator, pl.when init/finalize). Tight check.
    p32 = prepare_mlp_params(w_fc, b_fc, w_proj, b_proj, compute_dtype=jnp.float32)
    out_stream = jax.block_until_ready(mlp_pallas(x, *p32, tm=16, tns=128))
    assert out_stream.shape == (batch, seq, n_in)
    assert jnp.allclose(out_stream, ref, atol=1e-4, rtol=1e-4), "streamed f32 path mismatch"

    # 2) Default auto-planned path with bf16 weights cached once: takes the
    #    weight-resident fast path (weights fit in VMEM). Looser tolerance.
    pbf16 = prepare_mlp_params(w_fc, b_fc, w_proj, b_proj, compute_dtype=jnp.bfloat16)
    out_res = jax.block_until_ready(mlp_pallas(x, *pbf16))
    assert out_res.shape == (batch, seq, n_in)
    assert jnp.allclose(out_res, ref, atol=2e-2, rtol=2e-2), "resident bf16 path mismatch"

    # 3) f32 weights, auto-planned (resident) path: tight check.
    out_res32 = jax.block_until_ready(mlp_pallas(x, *p32))
    assert jnp.allclose(out_res32, ref, atol=1e-4, rtol=1e-4), "resident f32 path mismatch"

    print("KERNEL_OK")
</pallas_src>

<mosaic_0001>
module attributes {stable_mosaic.version = 11 : i64} {
  func.func @mlp_kernel_streamed(%arg0: i32, %arg1: i32, %arg2: memref<16x128xf32, #tpu.memory_space<vmem>>, %arg3: memref<128x128xf32, #tpu.memory_space<vmem>>, %arg4: memref<1x128xf32, #tpu.memory_space<vmem>>, %arg5: memref<128x128xf32, #tpu.memory_space<vmem>>, %arg6: memref<1x128xf32, #tpu.memory_space<vmem>>, %arg7: memref<16x128xf32, #tpu.memory_space<vmem>>, %arg8: memref<16x128xf32, #tpu.memory_space<vmem>>) attributes {dimension_semantics = [#tpu.dimension_semantics<parallel>, #tpu.dimension_semantics<arbitrary>], iteration_bounds = array<i64: 2, 4>, scalar_prefetch = 0 : i64, scratch_operands = 1 : i64, tpu.core_type = #tpu.core_type<tc>, window_params = [{transform_indices = @transform_0, window_bounds = array<i64: 16, 128>}, {transform_indices = @transform_1, window_bounds = array<i64: 128, 128>}, {transform_indices = @transform_2, window_bounds = array<i64: 1, 128>}, {transform_indices = @transform_3, window_bounds = array<i64: 128, 128>}, {pipeline_mode = #tpu.pipeline_mode<synchronous>, transform_indices = @transform_4, window_bounds = array<i64: 1, 128>}, {transform_indices = @transform_5, window_bounds = array<i64: 16, 128>}]} {
    %c0_i32 = arith.constant 0 : i32
    %0 = arith.cmpi eq, %arg1, %c0_i32 : i32
    %1 = arith.extui %0 : i1 to i32
    %c0_i32_0 = arith.constant 0 : i32
    %2 = arith.cmpi ne, %1, %c0_i32_0 : i32
    scf.if %2 {
      %cst_16 = arith.constant 0.000000e+00 : f32
      %25 = vector.broadcast %cst_16 : f32 to vector<16x128xf32>
      %c0_17 = arith.constant 0 : index
      %c0_18 = arith.constant 0 : index
      %26 = vector.load %arg8[%c0_17, %c0_18] : memref<16x128xf32, #tpu.memory_space<vmem>>, vector<16x128xf32>
      tpu.vector_store %arg8[%c0_17, %c0_18], %25 {strides = array<i32>} : memref<16x128xf32, #tpu.memory_space<vmem>>, vector<16x128xf32>,
    } else {
    }
    %c0 = arith.constant 0 : index
    %c0_1 = arith.constant 0 : index
    %3 = vector.load %arg2[%c0, %c0_1] : memref<16x128xf32, #tpu.memory_space<vmem>>, vector<16x128xf32>
    %c0_2 = arith.constant 0 : index
    %c0_3 = arith.constant 0 : index
    %4 = vector.load %arg3[%c0_2, %c0_3] : memref<128x128xf32, #tpu.memory_space<vmem>>, vector<128x128xf32>
    %cst = arith.constant dense<0.000000e+00> : vector<16x128xf32>
    %5 = tpu.matmul %3, %4, %cst {dimension_numbers = #tpu.dot_dimension_numbers<[1], [0], [0], [1], [0, 0, 1, 1], [], []>} : vector<16x128xf32>, vector<128x128xf32>, vector<16x128xf32> -> vector<16x128xf32>
    %c0_4 = arith.constant 0 : index
    %c0_5 = arith.constant 0 : index
    %6 = vector.load %arg4[%c0_4, %c0_5] : memref<1x128xf32, #tpu.memory_space<vmem>>, vector<1x128xf32>
    %7 = vector.broadcast %6 : vector<1x128xf32> to vector<16x128xf32>
    %8 = arith.addf %5, %7 : vector<16x128xf32>
    %cst_6 = arith.constant 1.702000e+00 : f32
    %9 = vector.broadcast %cst_6 : f32 to vector<16x128xf32>
    %10 = arith.mulf %9, %8 : vector<16x128xf32>
    %11 = arith.negf %10 : vector<16x128xf32>
    %12 = math.exp %11 : vector<16x128xf32>
    %cst_7 = arith.constant 1.000000e+00 : f32
    %13 = vector.broadcast %cst_7 : f32 to vector<16x128xf32>
    %14 = arith.addf %13, %12 : vector<16x128xf32>
    %15 = arith.divf %13, %14 : vector<16x128xf32>
    %16 = arith.mulf %8, %15 : vector<16x128xf32>
    %c0_8 = arith.constant 0 : index
    %c0_9 = arith.constant 0 : index
    %17 = vector.load %arg8[%c0_8, %c0_9] : memref<16x128xf32, #tpu.memory_space<vmem>>, vector<16x128xf32>
    %c0_10 = arith.constant 0 : index
    %c0_11 = arith.constant 0 : index
    %18 = vector.load %arg5[%c0_10, %c0_11] : memref<128x128xf32, #tpu.memory_space<vmem>>, vector<128x128xf32>
    %cst_12 = arith.constant dense<0.000000e+00> : vector<16x128xf32>
    %19 = tpu.matmul %16, %18, %cst_12 {dimension_numbers = #tpu.dot_dimension_numbers<[1], [0], [0], [1], [0, 0, 1, 1], [], []>} : vector<16x128xf32>, vector<128x128xf32>, vector<16x128xf32> -> vector<16x128xf32>
    %20 = arith.addf %17, %19 : vector<16x128xf32>
    %c0_13 = arith.constant 0 : index
    %c0_14 = arith.constant 0 : index
    %21 = vector.load %arg8[%c0_13, %c0_14] : memref<16x128xf32, #tpu.memory_space<vmem>>, vector<16x128xf32>
    tpu.vector_store %arg8[%c0_13, %c0_14], %20 {strides = array<i32>} : memref<16x128xf32, #tpu.memory_space<vmem>>, vector<16x128xf32>,
    %c3_i32 = arith.constant 3 : i32
    %22 = arith.cmpi eq, %arg1, %c3_i32 : i32
    %23 = arith.extui %22 : i1 to i32
    %c0_i32_15 = arith.constant 0 : i32
    %24 = arith.cmpi ne, %23, %c0_i32_15 : i32
    scf.if %24 {
      %c0_16 = arith.constant 0 : index
      %c0_17 = arith.constant 0 : index
      %25 = vector.load %arg8[%c0_16, %c0_17] : memref<16x128xf32, #tpu.memory_space<vmem>>, vector<16x128xf32>
      %c0_18 = arith.constant 0 : index
      %c0_19 = arith.constant 0 : index
      %26 = vector.load %arg6[%c0_18, %c0_19] : memref<1x128xf32, #tpu.memory_space<vmem>>, vector<1x128xf32>
      %27 = vector.broadcast %26 : vector<1x128xf32> to vector<16x128xf32>
      %28 = arith.addf %25, %27 : vector<16x128xf32>
      %c0_20 = arith.constant 0 : index
      %c0_21 = arith.constant 0 : index
      %29 = vector.load %arg7[%c0_20, %c0_21] : memref<16x128xf32, #tpu.memory_space<vmem>>, vector<16x128xf32>
      tpu.vector_store %arg7[%c0_20, %c0_21], %28 {strides = array<i32>} : memref<16x128xf32, #tpu.memory_space<vmem>>, vector<16x128xf32>,
    } else {
    }
    return
  }
  func.func @transform_0(%arg0: i32, %arg1: i32) -> (i32, i32) {
    %c0_i32 = arith.constant 0 : i32
    %c0_i32_0 = arith.constant 0 : i32
    return %arg0, %c0_i32 : i32, i32
  }
  func.func @transform_1(%arg0: i32, %arg1: i32) -> (i32, i32) {
    %c0_i32 = arith.constant 0 : i32
    %c0_i32_0 = arith.constant 0 : i32
    return %c0_i32, %arg1 : i32, i32
  }
  func.func @transform_2(%arg0: i32, %arg1: i32) -> (i32, i32) {
    %c0_i32 = arith.constant 0 : i32
    %c0_i32_0 = arith.constant 0 : i32
    return %c0_i32, %arg1 : i32, i32
  }
  func.func @transform_3(%arg0: i32, %arg1: i32) -> (i32, i32) {
    %c0_i32 = arith.constant 0 : i32
    %c0_i32_0 = arith.constant 0 : i32
    return %arg1, %c0_i32 : i32, i32
  }
  func.func @transform_4(%arg0: i32, %arg1: i32) -> (i32, i32) {
    %c0_i32 = arith.constant 0 : i32
    %c0_i32_0 = arith.constant 0 : i32
    %c0_i32_1 = arith.constant 0 : i32
    return %c0_i32, %c0_i32_0 : i32, i32
  }
  func.func @transform_5(%arg0: i32, %arg1: i32) -> (i32, i32) {
    %c0_i32 = arith.constant 0 : i32
    %c0_i32_0 = arith.constant 0 : i32
    return %arg0, %c0_i32 : i32, i32
  }
}

</mosaic_0001>

<llo_original>
// kernel: _mlp_pallas_2d.1
$region0: #{_mlp_pallas_2d.1}
  #allocation0 [shape = 'u32[]', space=smem, size = 0x4, offset = 0x4, fixed_abs, tag = 'smem constant byte address 0x4 - core index']
  #allocation1 [shape = 'u32[144,128]{1,0:T(1,128)}', space=vmem, size = 0x12000, scoped, tag = 'internal scratch']
  #allocation2 [shape = 'f32[16,128]{1,0:T(8,128)}', space=vmem, size = 0x2000, scoped, tag = 'scratch operand']
  %s0 = inlined_call_operand.hbm [shape: f32[32,128], index: 0, kind: input, shape index: {}]
  %s1 = inlined_call_operand.hbm [shape: f32[128,512], index: 1, kind: input, shape index: {}]
  %s2 = inlined_call_operand.hbm [shape: f32[1,512], index: 2, kind: input, shape index: {}]
  %s3 = inlined_call_operand.hbm [shape: f32[512,128], index: 3, kind: input, shape index: {}]
  %s4 = inlined_call_operand.hbm [shape: f32[1,128], index: 4, kind: input, shape index: {}]
  %s5 = inlined_call_operand.hbm [shape: f32[32,128], index: 5, kind: output, shape index: {}]
  %s6 = sld [smem:[#allocation0]]
  $region81: #{_mlp_pallas_2d.1} parent=0
    _
  %s8 = ssub.s32 1, %s6
  %s9 = scalar_select 0, %s8, %s6
  $region1: #{_mlp_pallas_2d.1} parent=0
    #allocation3 [shape = 'u8[16384]{0}', space=vmem, size = 0x4000, scoped, tag = 'input window, operand 0']
    #allocation4 [shape = 's32[2]{0}', space=sflag, size = 0x8, scoped, tag = 'scoped memory for _mlp_pallas_2d.1']
    #allocation5 [shape = 's32[2]{0}', space=sflag, size = 0x8, scoped, tag = 'scoped memory for _mlp_pallas_2d.1']
    #allocation6 [shape = 'u8[131072]{0}', space=vmem, size = 0x20000, scoped, tag = 'input window, operand 1']
    #allocation7 [shape = 's32[2]{0}', space=sflag, size = 0x8, scoped, tag = 'scoped memory for _mlp_pallas_2d.1']
    #allocation8 [shape = 'u8[1024]{0}', space=vmem, size = 0x400, scoped, tag = 'input window, operand 2']
    #allocation9 [shape = 'u8[131072]{0}', space=vmem, size = 0x20000, scoped, tag = 'input window, operand 3']
    #allocation10 [shape = 's32[2]{0}', space=sflag, size = 0x8, scoped, tag = 'scoped memory for _mlp_pallas_2d.1']
    #allocation11 [shape = 'u8[512]{0}', space=vmem, size = 0x400, scoped, tag = 'input window, operand 4, single buffered']
    #allocation12 [shape = 'u8[16384]{0}', space=vmem, size = 0x4000, scoped, tag = 'output window, operand 0']
    %10 = vsyncpa [#allocation4], 0
    %s11 = scalar_lea.sflag [#allocation4], 1
    %12 = vsyncpa %s11, 0
    %13 = vsyncpa [#allocation7], 0
    %s14 = scalar_lea.sflag [#allocation7], 1
    %15 = vsyncpa %s14, 0
    %16 = vsyncpa [#allocation10], 0
    %s17 = scalar_lea.sflag [#allocation10], 1
    %18 = vsyncpa %s17, 0
    %19 = vsyncpa [#allocation5], 0
    %s20 = scalar_lea.sflag [#allocation5], 1
    %21 = vsyncpa %s20, 0
    loop: start=0, step=1, limit=10
    $region2: #{_mlp_pallas_2d.1} parent=1 // loop_pre_header
      _
    $region3: #{_mlp_pallas_2d.1} parent=1 // loop_header
      %s23 = sphi 0, %s27
      %p24 = scmp.ge.s32.totalorder %s23, 10
      %s30 = sphi 0, %s42
      %s31 = sphi 0, %s38
      %s32 = sphi 0, %s30
      %s33 = sphi 0, %s31
      %s34 = sphi 0, %s32
      %s35 = sphi 0, %s33
      %s45 = sphi 0, %s47
      %s48 = sphi 0, %s45
      %s49 = sphi 0, %s48
      %s65 = sphi 0, %s49
      %s71 = sphi 0, %s73
      %s74 = sphi 0, %s71
      %s75 = sphi 0, %s74
      %s91 = sphi 0, %s75
      %s97 = sphi 0, %s99
      %s100 = sphi 0, %s97
      %s101 = sphi 0, %s100
      %s117 = sphi 0, %s101
      %s123 = sphi 0, %s125
      %s126 = sphi 0, %s123
      %s127 = sphi 0, %s126
      %s143 = sphi 0, %s127
      %s147 = sphi 0, %s147
      %s149 = sphi 0, %s147
      %s150 = sphi 0, %s149
      %s164 = sphi 0, %s150
      %s170 = sphi 0, %s172
      %s173 = sphi 0, %s170
      %s174 = sphi 0, %s173
      %s190 = sphi 0, %s174
    $region4: #{_mlp_pallas_2d.1} parent=1 // loop_header_branch
      %26 = sbr.rel (%p24) target = $region8
    $region5: #{_mlp_pallas_2d.1} parent=1 // loop_body
      %s28 = ssub.s32 %s23, 1
      %s29 = ssub.s32 %s23, 2
      %s36 = sadd.s32 1, %s31
      %p37 = scmp.ge.s32.totalorder %s36, 4
      %s38 = scalar_select %p37, 0, %s36
      %s39 = sadd.s32 1, %s30
      %s40 = scalar_select %p37, %s39, %s30
      %p41 = scmp.ge.s32.totalorder %s40, 2
      %s42 = scalar_select %p41, 0, %s40
      %s43 = ssub.s32 %s30, %s42
      %p44 = scmp.eq.s32.totalorder %s43, 0
      %s46 = sadd.s32 %s45, 1
      %s47 = scalar_select %p44, %s45, %s46
      %p50 = pneg %p44
      %p51 = scmp.eq.s32.totalorder %s23, 7
      %p52 = por %p50, %p51
      %p53 = scmp.ne.s32.totalorder %s45, %s48
      %p54 = scmp.eq.s32.totalorder %s23, 0
      %p55 = por %p53, %p54
      %p56 = scmp.ne.s32.totalorder %s45, %s48
      %p57 = scmp.eq.s32.totalorder %s28, 7
      %p58 = por %p56, %p57
      %p59 = scmp.ne.s32.totalorder %s48, %s49
      %p60 = scmp.eq.s32.totalorder %s28, 0
      %p61 = por %p59, %p60
      %p62 = scmp.ne.s32.totalorder %s48, %s49
      %p63 = scmp.eq.s32.totalorder %s29, 7
      %p64 = por %p62, %p63
      %p66 = scmp.ne.s32.totalorder %s49, %s65
      %p67 = scmp.eq.s32.totalorder %s29, 0
      %p68 = por %p66, %p67
      %s69 = ssub.s32 %s31, %s38
      %p70 = scmp.eq.s32.totalorder %s69, 0
      %s72 = sadd.s32 %s71, 1
      %s73 = scalar_select %p70, %s71, %s72
      %p76 = pneg %p70
      %p77 = scmp.eq.s32.totalorder %s23, 7
      %p78 = por %p76, %p77
      %p79 = scmp.ne.s32.totalorder %s71, %s74
      %p80 = scmp.eq.s32.totalorder %s23, 0
      %p81 = por %p79, %p80
      %p82 = scmp.ne.s32.totalorder %s71, %s74
      %p83 = scmp.eq.s32.totalorder %s28, 7
      %p84 = por %p82, %p83
      %p85 = scmp.ne.s32.totalorder %s74, %s75
      %p86 = scmp.eq.s32.totalorder %s28, 0
      %p87 = por %p85, %p86
      %p88 = scmp.ne.s32.totalorder %s74, %s75
      %p89 = scmp.eq.s32.totalorder %s29, 7
      %p90 = por %p88, %p89
      %p92 = scmp.ne.s32.totalorder %s75, %s91
      %p93 = scmp.eq.s32.totalorder %s29, 0
      %p94 = por %p92, %p93
      %s95 = ssub.s32 %s31, %s38
      %p96 = scmp.eq.s32.totalorder %s95, 0
      %s98 = sadd.s32 %s97, 1
      %s99 = scalar_select %p96, %s97, %s98
      %p102 = pneg %p96
      %p103 = scmp.eq.s32.totalorder %s23, 7
      %p104 = por %p102, %p103
      %p105 = scmp.ne.s32.totalorder %s97, %s100
      %p106 = scmp.eq.s32.totalorder %s23, 0
      %p107 = por %p105, %p106
      %p108 = scmp.ne.s32.totalorder %s97, %s100
      %p109 = scmp.eq.s32.totalorder %s28, 7
      %p110 = por %p108, %p109
      %p111 = scmp.ne.s32.totalorder %s100, %s101
      %p112 = scmp.eq.s32.totalorder %s28, 0
      %p113 = por %p111, %p112
      %p114 = scmp.ne.s32.totalorder %s100, %s101
      %p115 = scmp.eq.s32.totalorder %s29, 7
      %p116 = por %p114, %p115
      %p118 = scmp.ne.s32.totalorder %s101, %s117
      %p119 = scmp.eq.s32.totalorder %s29, 0
      %p120 = por %p118, %p119
      %s121 = ssub.s32 %s31, %s38
      %p122 = scmp.eq.s32.totalorder %s121, 0
      %s124 = sadd.s32 %s123, 1
      %s125 = scalar_select %p122, %s123, %s124
      %p128 = pneg %p122
      %p129 = scmp.eq.s32.totalorder %s23, 7
      %p130 = por %p128, %p129
      %p131 = scmp.ne.s32.totalorder %s123, %s126
      %p132 = scmp.eq.s32.totalorder %s23, 0
      %p133 = por %p131, %p132
      %p134 = scmp.ne.s32.totalorder %s123, %s126
      %p135 = scmp.eq.s32.totalorder %s28, 7
      %p136 = por %p134, %p135
      %p137 = scmp.ne.s32.totalorder %s126, %s127
      %p138 = scmp.eq.s32.totalorder %s28, 0
      %p139 = por %p137, %p138
      %p140 = scmp.ne.s32.totalorder %s126, %s127
      %p141 = scmp.eq.s32.totalorder %s29, 7
      %p142 = por %p140, %p141
      %p144 = scmp.ne.s32.totalorder %s127, %s143
      %p145 = scmp.eq.s32.totalorder %s29, 0
      %p146 = por %p144, %p145
      %s148 = sadd.s32 %s147, 1
      %p151 = scmp.eq.s32.totalorder %s23, 7
      %p152 = scmp.ne.s32.totalorder %s147, %s149
      %p153 = scmp.eq.s32.totalorder %s23, 0
      %p154 = por %p152, %p153
      %p155 = scmp.ne.s32.totalorder %s147, %s149
      %p156 = scmp.eq.s32.totalorder %s28, 7
      %p157 = por %p155, %p156
      %p158 = scmp.ne.s32.totalorder %s149, %s150
      %p159 = scmp.eq.s32.totalorder %s28, 0
      %p160 = por %p158, %p159
      %p161 = scmp.ne.s32.totalorder %s149, %s150
      %p162 = scmp.eq.s32.totalorder %s29, 7
      %p163 = por %p161, %p162
      %p165 = scmp.ne.s32.totalorder %s150, %s164
      %p166 = scmp.eq.s32.totalorder %s29, 0
      %p167 = por %p165, %p166
      %s168 = ssub.s32 %s30, %s42
      %p169 = scmp.eq.s32.totalorder %s168, 0
      %s171 = sadd.s32 %s170, 1
      %s172 = scalar_select %p169, %s170, %s171
      %p175 = pneg %p169
      %p176 = scmp.eq.s32.totalorder %s23, 7
      %p177 = por %p175, %p176
      %p178 = scmp.ne.s32.totalorder %s170, %s173
      %p179 = scmp.eq.s32.totalorder %s23, 0
      %p180 = por %p178, %p179
      %p181 = scmp.ne.s32.totalorder %s170, %s173
      %p182 = scmp.eq.s32.totalorder %s28, 7
      %p183 = por %p181, %p182
      %p184 = scmp.ne.s32.totalorder %s173, %s174
      %p185 = scmp.eq.s32.totalorder %s28, 0
      %p186 = por %p184, %p185
      %p187 = scmp.ne.s32.totalorder %s173, %s174
      %p188 = scmp.eq.s32.totalorder %s29, 7
      %p189 = por %p187, %p188
      %p191 = scmp.ne.s32.totalorder %s174, %s190
      %p192 = scmp.eq.s32.totalorder %s29, 0
      %p193 = por %p191, %p192
      %p194 = scmp.le.s32.totalorder 1, %s23
      %p195 = scmp.lt.s32.totalorder %s23, 9
      %p196 = pnand %p194, %p195
      %p197 = pneg %p196
      // Predicated region
      $region9: #{_mlp_pallas_2d.1} parent=5 // pred_check
        _
      $region10: #{_mlp_pallas_2d.1} parent=5 // pred_check_branch
        %199 = sbr.rel (%p196) target = $region12
      $region11: #{_mlp_pallas_2d.1} parent=5 // pred_region
        %s200 = ssub.s32 %s23, 1
        // Predicated region
        $region13: #{_mlp_pallas_2d.1} parent=11 // pred_check
          %p201 = pneg %p160
        $region14: #{_mlp_pallas_2d.1} parent=11 // pred_check_branch
          %203 = sbr.rel (%p201) target = $region16
        $region15: #{_mlp_pallas_2d.1} parent=11 // pred_region
          %s205 = ssub.s32 16, 16
          %206 = vsyncadd [#allocation10], %s205
          %s208 = sshll.u32 [#allocation11], 4
          %s209 = int_to_ptr.vmem [resolvable:$true] %s208
          %211 = dma.hbm_to_vmem [thread:$0]  %s4, 16, %s209, [#allocation10]
        $region16: #{_mlp_pallas_2d.1} parent=11 // pred_fallthru
          _
      $region12: #{_mlp_pallas_2d.1} parent=5 // pred_fallthru
        _
      %p212 = scmp.lt.s32.totalorder %s23, 8
      // Predicated region
      $region17: #{_mlp_pallas_2d.1} parent=5 // pred_check
        %p213 = pneg %p212
      $region18: #{_mlp_pallas_2d.1} parent=5 // pred_check_branch
        %215 = sbr.rel (%p213) target = $region20
      $region19: #{_mlp_pallas_2d.1} parent=5 // pred_region
        // Predicated region
        $region21: #{_mlp_pallas_2d.1} parent=19 // pred_check
          %p216 = pneg %p55
        $region22: #{_mlp_pallas_2d.1} parent=19 // pred_check_branch
          %218 = sbr.rel (%p216) target = $region24
        $region23: #{_mlp_pallas_2d.1} parent=19 // pred_region
          %s219 = sand.u32 %s45, 1
          %s220 = scalar_lea.sflag [#allocation4], %s219
          %s221 = sand.u32 %s45, 1
          %s222 = smul.addr %s221, 16
          %s223 = scalar_lea.vmem [#allocation3], %s222
          %s224 = smul.u32 2, %s30
          %s226 = ssub.s32 256, 256
          %227 = vsyncadd %s220, %s226
          %s228 = smul.addr %s224, 128
          %s229 = scalar_lea.hbm %s0, %s228
          %s230 = sshll.u32 %s223, 4
          %s231 = int_to_ptr.vmem [resolvable:$true] %s230
          %236 = dma.hbm_to_vmem [thread:$0]  %s229, 256, %s231, %s220, 128, 128, 8
        $region24: #{_mlp_pallas_2d.1} parent=19 // pred_fallthru
          _
        // Predicated region
        $region25: #{_mlp_pallas_2d.1} parent=19 // pred_check
          %p237 = pneg %p81
        $region26: #{_mlp_pallas_2d.1} parent=19 // pred_check_branch
          %239 = sbr.rel (%p237) target = $region28
        $region27: #{_mlp_pallas_2d.1} parent=19 // pred_region
          %s240 = sand.u32 %s23, 1
          %s241 = scalar_lea.sflag [#allocation7], %s240
          %s242 = sand.u32 %s71, 1
          %s243 = smul.addr %s242, 128
          %s244 = scalar_lea.vmem [#allocation6], %s243
          %s246 = ssub.s32 2048, 2048
          %247 = vsyncadd %s241, %s246
          %s248 = smul.addr %s31, 128
          %s249 = scalar_lea.hbm %s1, %s248
          %s250 = sshll.u32 %s244, 4
          %s251 = int_to_ptr.vmem [resolvable:$true] %s250
          %256 = dma.hbm_to_vmem [thread:$0]  %s249, 2048, %s251, %s241, 512, 128, 8
        $region28: #{_mlp_pallas_2d.1} parent=19 // pred_fallthru
          _
        // Predicated region
        $region29: #{_mlp_pallas_2d.1} parent=19 // pred_check
          %p257 = pneg %p107
        $region30: #{_mlp_pallas_2d.1} parent=19 // pred_check_branch
          %259 = sbr.rel (%p257) target = $region32
        $region31: #{_mlp_pallas_2d.1} parent=19 // pred_region
          %s260 = sand.u32 %s23, 1
          %s261 = scalar_lea.sflag [#allocation7], %s260
          %s262 = sand.u32 %s97, 1
          %s263 = scalar_lea.vmem [#allocation8], %s262
          %s265 = ssub.s32 16, 16
          %266 = vsyncadd %s261, %s265
          %s267 = smul.addr %s31, 16
          %s268 = scalar_lea.hbm %s2, %s267
          %s270 = sshll.u32 %s263, 4
          %s271 = int_to_ptr.vmem [resolvable:$true] %s270
          %273 = dma.hbm_to_vmem [thread:$0]  %s268, 16, %s271, %s261
        $region32: #{_mlp_pallas_2d.1} parent=19 // pred_fallthru
          _
        // Predicated region
        $region33: #{_mlp_pallas_2d.1} parent=19 // pred_check
          %p274 = pneg %p133
        $region34: #{_mlp_pallas_2d.1} parent=19 // pred_check_branch
          %276 = sbr.rel (%p274) target = $region36
        $region35: #{_mlp_pallas_2d.1} parent=19 // pred_region
          %s277 = sand.u32 %s23, 1
          %s278 = scalar_lea.sflag [#allocation10], %s277
          %s279 = sand.u32 %s123, 1
          %s280 = smul.addr %s279, 128
          %s281 = scalar_lea.vmem [#allocation9], %s280
          %s282 = smul.u32 16, %s31
          %s284 = ssub.s32 2048, 2048
          %285 = vsyncadd %s278, %s284
          %s286 = smul.addr %s282, 128
          %s287 = scalar_lea.hbm %s3, %s286
          %s288 = sshll.u32 %s281, 4
          %s289 = int_to_ptr.vmem [resolvable:$true] %s288
          %294 = dma.hbm_to_vmem [thread:$0]  %s287, 2048, %s289, %s278, 128, 128, 8
        $region36: #{_mlp_pallas_2d.1} parent=19 // pred_fallthru
          _
      $region20: #{_mlp_pallas_2d.1} parent=5 // pred_fallthru
        _
      %p295 = scmp.le.s32.totalorder 1, %s23
      %p296 = scmp.lt.s32.totalorder %s23, 9
      %p297 = pnand %p295, %p296
      %p298 = pneg %p297
      // Predicated region
      $region37: #{_mlp_pallas_2d.1} parent=5 // pred_check
        _
      $region38: #{_mlp_pallas_2d.1} parent=5 // pred_check_branch
        %300 = sbr.rel (%p297) target = $region40
      $region39: #{_mlp_pallas_2d.1} parent=5 // pred_region
        %s301 = ssub.s32 %s23, 1
        %s302 = sand.u32 %s48, 1
        %s303 = scalar_lea.sflag [#allocation4], %s302
        %s304 = sand.u32 %s48, 1
        %s305 = smul.addr %s304, 16
        %s306 = scalar_lea.vmem [#allocation3], %s305
        // Predicated region
        $region41: #{_mlp_pallas_2d.1} parent=39 // pred_check
          %p307 = pneg %p61
        $region42: #{_mlp_pallas_2d.1} parent=39 // pred_check_branch
          %309 = sbr.rel (%p307) target = $region44
        $region43: #{_mlp_pallas_2d.1} parent=39 // pred_region
          %310 = dma.done %s303, 256
        $region44: #{_mlp_pallas_2d.1} parent=39 // pred_fallthru
          _
        %s311 = sand.u32 %s28, 1
        %s312 = scalar_lea.sflag [#allocation7], %s311
        %s313 = sand.u32 %s74, 1
        %s314 = smul.addr %s313, 128
        %s315 = scalar_lea.vmem [#allocation6], %s314
        // Predicated region
        $region45: #{_mlp_pallas_2d.1} parent=39 // pred_check
          %p316 = pneg %p87
        $region46: #{_mlp_pallas_2d.1} parent=39 // pred_check_branch
          %318 = sbr.rel (%p316) target = $region48
        $region47: #{_mlp_pallas_2d.1} parent=39 // pred_region
          %319 = dma.done %s312, 2048
        $region48: #{_mlp_pallas_2d.1} parent=39 // pred_fallthru
          _
        %s320 = sand.u32 %s28, 1
        %s321 = scalar_lea.sflag [#allocation7], %s320
        %s322 = sand.u32 %s100, 1
        %s323 = scalar_lea.vmem [#allocation8], %s322
        // Predicated region
        $region49: #{_mlp_pallas_2d.1} parent=39 // pred_check
          %p324 = pneg %p113
        $region50: #{_mlp_pallas_2d.1} parent=39 // pred_check_branch
          %326 = sbr.rel (%p324) target = $region52
        $region51: #{_mlp_pallas_2d.1} parent=39 // pred_region
          %327 = dma.done %s321, 16
        $region52: #{_mlp_pallas_2d.1} parent=39 // pred_fallthru
          _
        %s328 = sand.u32 %s28, 1
        %s329 = scalar_lea.sflag [#allocation10], %s328
        %s330 = sand.u32 %s126, 1
        %s331 = smul.addr %s330, 128
        %s332 = scalar_lea.vmem [#allocation9], %s331
        // Predicated region
        $region53: #{_mlp_pallas_2d.1} parent=39 // pred_check
          %p333 = pneg %p139
        $region54: #{_mlp_pallas_2d.1} parent=39 // pred_check_branch
          %335 = sbr.rel (%p333) target = $region56
        $region55: #{_mlp_pallas_2d.1} parent=39 // pred_region
          %336 = dma.done %s329, 2048
        $region56: #{_mlp_pallas_2d.1} parent=39 // pred_fallthru
          _
        // Predicated region
        $region57: #{_mlp_pallas_2d.1} parent=39 // pred_check
          %p337 = pneg %p160
        $region58: #{_mlp_pallas_2d.1} parent=39 // pred_check_branch
          %339 = sbr.rel (%p337) target = $region60
        $region59: #{_mlp_pallas_2d.1} parent=39 // pred_region
          %340 = dma.done [#allocation10], 16
        $region60: #{_mlp_pallas_2d.1} parent=39 // pred_fallthru
          _
        %s341 = sand.u32 %s48, 1
        %s342 = scalar_lea.sflag [#allocation4], %s341
        %s343 = sand.u32 %s48, 1
        %s344 = smul.addr %s343, 16
        %s345 = scalar_lea.vmem [#allocation3], %s344
        %p346 = pneg %p61
        %p347 = pneg %p58
        %s348 = sand.u32 %s28, 1
        %s349 = scalar_lea.sflag [#allocation7], %s348
        %s350 = sand.u32 %s74, 1
        %s351 = smul.addr %s350, 128
        %s352 = scalar_lea.vmem [#allocation6], %s351
        %p353 = pneg %p87
        %p354 = pneg %p84
        %s355 = sand.u32 %s28, 1
        %s356 = scalar_lea.sflag [#allocation7], %s355
        %s357 = sand.u32 %s100, 1
        %s358 = scalar_lea.vmem [#allocation8], %s357
        %p359 = pneg %p113
        %p360 = pneg %p110
        %s361 = sand.u32 %s28, 1
        %s362 = scalar_lea.sflag [#allocation10], %s361
        %s363 = sand.u32 %s126, 1
        %s364 = smul.addr %s363, 128
        %s365 = scalar_lea.vmem [#allocation9], %s364
        %p366 = pneg %p139
        %p367 = pneg %p136
        %p368 = pneg %p160
        %p369 = pneg %p157
        %p370 = pneg %p186
        %p371 = pneg %p183
        %s372 = sand.u32 %s173, 1
        %s373 = scalar_lea.sflag [#allocation5], %s372
        %s374 = sand.u32 %s173, 1
        %s375 = smul.addr %s374, 16
        %s376 = scalar_lea.vmem [#allocation12], %s375
        %s377 = smul.u32 2, %s32
        %s378 = smul.u32 16, %s33
        %s379 = smul.u32 2, %s32
        %p380 = scmp.eq.s32.totalorder %s33, 0
        // Predicated region
        $region61: #{_mlp_pallas_2d.1} parent=39 // pred_check
          %p381 = pneg %p380
        $region62: #{_mlp_pallas_2d.1} parent=39 // pred_check_branch
          %383 = sbr.rel (%p381) target = $region64
        $region63: #{_mlp_pallas_2d.1} parent=39 // pred_region
          %384 = vst [vmem:[#allocation2] sm:$0xff] 0.0
          %385 = vst [vmem:[#allocation2 + $0x8] sm:$0xff] 0.0
        $region64: #{_mlp_pallas_2d.1} parent=39 // pred_fallthru
          _
        %v386 = vld [vmem:[%s306] sm:$0xff]
        %v387 = vld [vmem:[%s306 + $0x8] sm:$0xff]
        %v388 = vld [vmem:[%s315] sm:$0xff]
        %v389 = vld [vmem:[%s315 + $0x8] sm:$0xff]
        %v390 = vld [vmem:[%s315 + $0x10] sm:$0xff]
        %v391 = vld [vmem:[%s315 + $0x18] sm:$0xff]
        %v392 = vld [vmem:[%s315 + $0x20] sm:$0xff]
        %v393 = vld [vmem:[%s315 + $0x28] sm:$0xff]
        %v394 = vld [vmem:[%s315 + $0x30] sm:$0xff]
        %v395 = vld [vmem:[%s315 + $0x38] sm:$0xff]
        %v396 = vld [vmem:[%s315 + $0x40] sm:$0xff]
        %v397 = vld [vmem:[%s315 + $0x48] sm:$0xff]
        %v398 = vld [vmem:[%s315 + $0x50] sm:$0xff]
        %v399 = vld [vmem:[%s315 + $0x58] sm:$0xff]
        %v400 = vld [vmem:[%s315 + $0x60] sm:$0xff]
        %v401 = vld [vmem:[%s315 + $0x68] sm:$0xff]
        %v402 = vld [vmem:[%s315 + $0x70] sm:$0xff]
        %v403 = vld [vmem:[%s315 + $0x78] sm:$0xff]
        %v404 = vld [vmem:[%s323] sm:$0x1]
        %v406 = vlaneseq
        %v407 = vshrl.u32 %v406, 7
        %v408 = vsub.s32 0, %v407
        %v409 = vrot.slane %v404, %v408
        %411 = vmatprep.subr.mxu0 0.0
        %412 = vmatpush1.msra.mxu0 %v388
        %413 = vmatprep.subr.mxu0 0.0
        %414 = vmatpush1.msra.mxu0 %v389
        %415 = vmatprep.subr.mxu0 0.0
        %416 = vmatpush1.msra.mxu0 %v390
        %417 = vmatprep.subr.mxu0 0.0
        %418 = vmatpush1.msra.mxu0 %v391
        %419 = vmatprep.subr.mxu0 0.0
        %420 = vmatpush1.msra.mxu0 %v392
        %421 = vmatprep.subr.mxu0 0.0
        %422 = vmatpush1.msra.mxu0 %v393
        %423 = vmatprep.subr.mxu0 0.0
        %424 = vmatpush1.msra.mxu0 %v394
        %425 = vmatprep.subr.mxu0 0.0
        %426 = vmatpush1.msra.mxu0 %v395
        %427 = vmatprep.subr.mxu0 0.0
        %428 = vmatpush1.msra.mxu0 %v396
        %429 = vmatprep.subr.mxu0 0.0
        %430 = vmatpush1.msra.mxu0 %v397
        %431 = vmatprep.subr.mxu0 0.0
        %432 = vmatpush1.msra.mxu0 %v398
        %433 = vmatprep.subr.mxu0 0.0
        %434 = vmatpush1.msra.mxu0 %v399
        %435 = vmatprep.subr.mxu0 0.0
        %436 = vmatpush1.msra.mxu0 %v400
        %437 = vmatprep.subr.mxu0 0.0
        %438 = vmatpush1.msra.mxu0 %v401
        %439 = vmatprep.subr.mxu0 0.0
        %440 = vmatpush1.msra.mxu0 %v402
        %441 = vmatprep.subr.mxu0 0.0
        %442 = vmatpush1.msra.mxu0 %v403
        %443 = vmatprep.subr.mxu0 0.0
        %444 = vmatpush1.msra.mxu0 0.0
        %445 = vmatprep.subr.mxu0 0.0
        %446 = vmatpush1.msra.mxu0 0.0
        %447 = vmatprep.subr.mxu0 0.0
        %448 = vmatpush1.msra.mxu0 0.0
        %449 = vmatprep.subr.mxu0 0.0
        %450 = vmatpush1.msra.mxu0 0.0
        %451 = vmatprep.subr.mxu0 0.0
        %452 = vmatpush1.msra.mxu0 0.0
        %453 = vmatprep.subr.mxu0 0.0
        %454 = vmatpush1.msra.mxu0 0.0
        %455 = vmatprep.subr.mxu0 0.0
        %456 = vmatpush1.msra.mxu0 0.0
        %457 = vmatprep.subr.mxu0 0.0
        %458 = vmatpush1.msra.mxu0 0.0
        %459 = vmatprep.subr.mxu0 0.0
        %460 = vmatpush1.msra.mxu0 0.0
        %461 = vmatprep.subr.mxu0 0.0
        %462 = vmatpush1.msra.mxu0 0.0
        %463 = vmatprep.subr.mxu0 0.0
        %464 = vmatpush1.msra.mxu0 0.0
        %465 = vmatprep.subr.mxu0 0.0
        %466 = vmatpush1.msra.mxu0 0.0
        %467 = vmatprep.subr.mxu0 0.0
        %468 = vmatpush1.msra.mxu0 0.0
        %469 = vmatprep.subr.mxu0 0.0
        %470 = vmatpush1.msra.mxu0 0.0
        %471 = vmatprep.subr.mxu0 0.0
        %472 = vmatpush1.msra.mxu0 0.0
        %473 = vmatprep.subr.mxu0 0.0
        %474 = vmatpush1.msra.mxu0 0.0
        %475 = vmatprep.mubr.f32.mxu0 0.0
        %476 = vmatmul.mubr.f32.gmra.mrb[0].mxu0 %v386
        %v477 = vpop.f32.mrb[0].mxu0
        %v478 = vadd.f32 %v409, %v477
        %v479 = vpop.f32.mrb[0].mxu0
        %480 = vmatprep.mubr.f32.mxu0 0.0
        %481 = vmatmul.mubr.f32.gmra.mrb[0].mxu0 %v387
        %v482 = vpop.f32.mrb[0].mxu0
        %v483 = vadd.f32 %v409, %v482
        %v484 = vpop.f32.mrb[0].mxu0
        %485 = vdwg.mxu0
        %v486 = vmul.f32 %v478, 1.702
        %v487 = vmul.f32 %v483, 1.702
        %v488 = vxor.u32 %v486, 2147483648
        %v489 = vxor.u32 %v487, 2147483648
        %v490 = vmul.f32 %v488, 1.442695
        %v491 = vpow.pop %v490
        %v492 = vmul.f32 %v489, 1.442695
        %v493 = vpow.pop %v492
        %v494 = vadd.f32 %v491, 1.0
        %v495 = vadd.f32 %v493, 1.0
        %v496 = vrcp.pop %v494
        %v497 = vmul.f32 1.0, %v496
        %v498 = vrcp.pop %v495
        %v499 = vmul.f32 1.0, %v498
        %v500 = vmul.f32 %v478, %v497
        %v501 = vmul.f32 %v483, %v499
        %v502 = vld [vmem:[#allocation2] sm:$0xff]
        %v503 = vld [vmem:[#allocation2 + $0x8] sm:$0xff]
        %v504 = vld [vmem:[%s332] sm:$0xff]
        %v505 = vld [vmem:[%s332 + $0x8] sm:$0xff]
        %v506 = vld [vmem:[%s332 + $0x10] sm:$0xff]
        %v507 = vld [vmem:[%s332 + $0x18] sm:$0xff]
        %v508 = vld [vmem:[%s332 + $0x20] sm:$0xff]
        %v509 = vld [vmem:[%s332 + $0x28] sm:$0xff]
        %v510 = vld [vmem:[%s332 + $0x30] sm:$0xff]
        %v511 = vld [vmem:[%s332 + $0x38] sm:$0xff]
        %v512 = vld [vmem:[%s332 + $0x40] sm:$0xff]
        %v513 = vld [vmem:[%s332 + $0x48] sm:$0xff]
        %v514 = vld [vmem:[%s332 + $0x50] sm:$0xff]
        %v515 = vld [vmem:[%s332 + $0x58] sm:$0xff]
        %v516 = vld [vmem:[%s332 + $0x60] sm:$0xff]
        %v517 = vld [vmem:[%s332 + $0x68] sm:$0xff]
        %v518 = vld [vmem:[%s332 + $0x70] sm:$0xff]
        %v519 = vld [vmem:[%s332 + $0x78] sm:$0xff]
        %520 = vmatprep.subr.mxu0 0.0
        %521 = vmatpush1.msra.mxu0 %v504
        %522 = vmatprep.subr.mxu0 0.0
        %523 = vmatpush1.msra.mxu0 %v505
        %524 = vmatprep.subr.mxu0 0.0
        %525 = vmatpush1.msra.mxu0 %v506
        %526 = vmatprep.subr.mxu0 0.0
        %527 = vmatpush1.msra.mxu0 %v507
        %528 = vmatprep.subr.mxu0 0.0
        %529 = vmatpush1.msra.mxu0 %v508
        %530 = vmatprep.subr.mxu0 0.0
        %531 = vmatpush1.msra.mxu0 %v509
        %532 = vmatprep.subr.mxu0 0.0
        %533 = vmatpush1.msra.mxu0 %v510
        %534 = vmatprep.subr.mxu0 0.0
        %535 = vmatpush1.msra.mxu0 %v511
        %536 = vmatprep.subr.mxu0 0.0
        %537 = vmatpush1.msra.mxu0 %v512
        %538 = vmatprep.subr.mxu0 0.0
        %539 = vmatpush1.msra.mxu0 %v513
        %540 = vmatprep.subr.mxu0 0.0
        %541 = vmatpush1.msra.mxu0 %v514
        %542 = vmatprep.subr.mxu0 0.0
        %543 = vmatpush1.msra.mxu0 %v515
        %544 = vmatprep.subr.mxu0 0.0
        %545 = vmatpush1.msra.mxu0 %v516
        %546 = vmatprep.subr.mxu0 0.0
        %547 = vmatpush1.msra.mxu0 %v517
        %548 = vmatprep.subr.mxu0 0.0
        %549 = vmatpush1.msra.mxu0 %v518
        %550 = vmatprep.subr.mxu0 0.0
        %551 = vmatpush1.msra.mxu0 %v519
        %552 = vmatprep.subr.mxu0 0.0
        %553 = vmatpush1.msra.mxu0 0.0
        %554 = vmatprep.subr.mxu0 0.0
        %555 = vmatpush1.msra.mxu0 0.0
        %556 = vmatprep.subr.mxu0 0.0
        %557 = vmatpush1.msra.mxu0 0.0
        %558 = vmatprep.subr.mxu0 0.0
        %559 = vmatpush1.msra.mxu0 0.0
        %560 = vmatprep.subr.mxu0 0.0
        %561 = vmatpush1.msra.mxu0 0.0
        %562 = vmatprep.subr.mxu0 0.0
        %563 = vmatpush1.msra.mxu0 0.0
        %564 = vmatprep.subr.mxu0 0.0
        %565 = vmatpush1.msra.mxu0 0.0
        %566 = vmatprep.subr.mxu0 0.0
        %567 = vmatpush1.msra.mxu0 0.0
        %568 = vmatprep.subr.mxu0 0.0
        %569 = vmatpush1.msra.mxu0 0.0
        %570 = vmatprep.subr.mxu0 0.0
        %571 = vmatpush1.msra.mxu0 0.0
        %572 = vmatprep.subr.mxu0 0.0
        %573 = vmatpush1.msra.mxu0 0.0
        %574 = vmatprep.subr.mxu0 0.0
        %575 = vmatpush1.msra.mxu0 0.0
        %576 = vmatprep.subr.mxu0 0.0
        %577 = vmatpush1.msra.mxu0 0.0
        %578 = vmatprep.subr.mxu0 0.0
        %579 = vmatpush1.msra.mxu0 0.0
        %580 = vmatprep.subr.mxu0 0.0
        %581 = vmatpush1.msra.mxu0 0.0
        %582 = vmatprep.subr.mxu0 0.0
        %583 = vmatpush1.msra.mxu0 0.0
        %584 = vmatprep.mubr.f32.mxu0 0.0
        %585 = vmatmul.mubr.f32.gmra.mrb[0].mxu0 %v500
        %v586 = vpop.f32.mrb[0].mxu0
        %v587 = vadd.f32 0.0, %v586
        %v588 = vpop.f32.mrb[0].mxu0
        %589 = vmatprep.mubr.f32.mxu0 0.0
        %590 = vmatmul.mubr.f32.gmra.mrb[0].mxu0 %v501
        %v591 = vpop.f32.mrb[0].mxu0
        %v592 = vadd.f32 0.0, %v591
        %v593 = vpop.f32.mrb[0].mxu0
        %594 = vdwg.mxu0
        %v595 = vadd.f32 %v502, %v587
        %v596 = vadd.f32 %v503, %v592
        %597 = vst [vmem:[#allocation2] sm:$0xff] %v595
        %598 = vst [vmem:[#allocation2 + $0x8] sm:$0xff] %v596
        %p599 = scmp.eq.s32.totalorder %s33, 3
        // Predicated region
        $region65: #{_mlp_pallas_2d.1} parent=39 // pred_check
          %p600 = pneg %p599
        $region66: #{_mlp_pallas_2d.1} parent=39 // pred_check_branch
          %602 = sbr.rel (%p600) target = $region68
        $region67: #{_mlp_pallas_2d.1} parent=39 // pred_region
          %v603 = vld [vmem:[#allocation2] sm:$0xff]
          %v604 = vld [vmem:[#allocation2 + $0x8] sm:$0xff]
          %v605 = vld [vmem:[#allocation11] sm:$0x1]
          %v607 = vlaneseq
          %v608 = vshrl.u32 %v607, 7
          %v609 = vsub.s32 0, %v608
          %v610 = vrot.slane %v605, %v609
          %v612 = vadd.f32 %v603, %v610
          %v613 = vadd.f32 %v604, %v610
          %614 = vst [vmem:[%s376] sm:$0xff] %v612
          %615 = vst [vmem:[%s376 + $0x8] sm:$0xff] %v613
        $region68: #{_mlp_pallas_2d.1} parent=39 // pred_fallthru
          _
        %s616 = sand.u32 %s173, 1
        %s617 = scalar_lea.sflag [#allocation5], %s616
        %s618 = sand.u32 %s173, 1
        %s619 = smul.addr %s618, 16
        %s620 = scalar_lea.vmem [#allocation12], %s619
        // Predicated region
        $region69: #{_mlp_pallas_2d.1} parent=39 // pred_check
          %p621 = pneg %p183
        $region70: #{_mlp_pallas_2d.1} parent=39 // pred_check_branch
          %623 = sbr.rel (%p621) target = $region72
        $region71: #{_mlp_pallas_2d.1} parent=39 // pred_region
          %s624 = smul.u32 2, %s32
          %s626 = ssub.s32 256, 256
          %627 = vsyncadd %s617, %s626
          %s628 = smul.addr %s624, 128
          %s629 = scalar_lea.hbm %s5, %s628
          %s630 = sshll.u32 %s620, 4
          %s631 = int_to_ptr.vmem [resolvable:$true] %s630
          %636 = dma.vmem_to_hbm [thread:$0]  %s631, 256, %s629, %s617, 128, 128, 8
        $region72: #{_mlp_pallas_2d.1} parent=39 // pred_fallthru
          _
      $region40: #{_mlp_pallas_2d.1} parent=5 // pred_fallthru
        _
      %p637 = scmp.le.s32.totalorder 2, %s23
      // Predicated region
      $region73: #{_mlp_pallas_2d.1} parent=5 // pred_check
        %p638 = pneg %p637
      $region74: #{_mlp_pallas_2d.1} parent=5 // pred_check_branch
        %640 = sbr.rel (%p638) target = $region76
      $region75: #{_mlp_pallas_2d.1} parent=5 // pred_region
        %s641 = ssub.s32 %s23, 2
        // Predicated region
        $region77: #{_mlp_pallas_2d.1} parent=75 // pred_check
          %p642 = pneg %p189
        $region78: #{_mlp_pallas_2d.1} parent=75 // pred_check_branch
          %644 = sbr.rel (%p642) target = $region80
        $region79: #{_mlp_pallas_2d.1} parent=75 // pred_region
          %s645 = sand.u32 %s174, 1
          %s646 = scalar_lea.sflag [#allocation5], %s645
          %s647 = sand.u32 %s174, 1
          %s648 = smul.addr %s647, 16
          %s649 = scalar_lea.vmem [#allocation12], %s648
          %650 = dma.done %s646, 256
        $region80: #{_mlp_pallas_2d.1} parent=75 // pred_fallthru
          _
      $region76: #{_mlp_pallas_2d.1} parent=5 // pred_fallthru
        _
    $region6: #{_mlp_pallas_2d.1} parent=1 // loop_footer
      %s27 = sadd.s32 1, %s23
    $region7: #{_mlp_pallas_2d.1} parent=1 // loop_footer_branch
      %22 = sbr.rel target = $region3
    $region8: #{_mlp_pallas_2d.1} parent=1 // loop_exit
      _
    %651 = vsyncpa [#allocation4], 1
    %s652 = scalar_lea.sflag [#allocation4], 1
    %653 = vsyncpa %s652, 1
    %654 = vsyncpa [#allocation7], 1
    %s655 = scalar_lea.sflag [#allocation7], 1
    %656 = vsyncpa %s655, 1
    %657 = vsyncpa [#allocation10], 1
    %s658 = scalar_lea.sflag [#allocation10], 1
    %659 = vsyncpa %s658, 1
    %660 = vsyncpa [#allocation5], 1
    %s661 = scalar_lea.sflag [#allocation5], 1
    %662 = vsyncpa %s661, 1

</llo_original>
